<compile_context>
chip_gen: v6e
topology: v6e:2x2x1
jax: 0.10.0
libtpu: 0.0.40
codegen_flags: <defaults>
</compile_context>

<pallas_src>
import numpy as np
import jax
import jax.numpy as jnp
from jax.experimental import pallas as pl
from jax.experimental.pallas import tpu as pltpu


_VMEM = pl.BlockSpec(memory_space=pltpu.MemorySpace.VMEM)


def _ceil_to(n, m):
    return ((n + m - 1) // m) * m


# ----------------------------------------------------------------------------
# Kernels.  The packed weight slab is sliced with static, 8-row-aligned views.
# ----------------------------------------------------------------------------
def _make_generate_kernel(layer_offs, n_lin):
    """Gridded (batch axis) MLP -> one lane-dense (1, lane_w) output row."""

    def kernel(x_ref, w_ref, out_ref):
        h = x_ref[0].astype(jnp.float32)                          # (1, d_in)
        for li, (w0, wn, br) in enumerate(layer_offs):            # static unroll
            h = (jnp.dot(h, w_ref[w0:w0 + wn, :],
                         preferred_element_type=jnp.float32)
                 + w_ref[br:br + 1, :])
            if li < n_lin - 1:
                h = jnp.maximum(h, 0.0)
        out_ref[0] = h.astype(out_ref.dtype)                      # (1, lane_w)

    return kernel


def _make_fused_kernel(layer_offs, n_lin, net_in, e_off, eb_off, s_off, lane_w):
    """Grid-less: generate params AND apply ConfNet (y = cn @ par + bias).

    par/bias never leave vregs before being consumed: the flat parameter row
    `h` feeds   y = ((cn @ E_top + E_bias) * h) @ S   with constant E/S matrices
    packed into the weight slab (no in-kernel reshape, no per-row loop).
    """

    def kernel(x_ref, cn_ref, w_ref, out_ref, y_ref):
        h = x_ref[...].astype(jnp.float32)                        # (1, d_in)
        for li, (w0, wn, br) in enumerate(layer_offs):
            h = (jnp.dot(h, w_ref[w0:w0 + wn, :],
                         preferred_element_type=jnp.float32)
                 + w_ref[br:br + 1, :])
            if li < n_lin - 1:
                h = jnp.maximum(h, 0.0)
        out_ref[...] = h.astype(out_ref.dtype)                    # (1, lane_w)

        # ConfNet apply, all lane-dense, params consumed straight from vregs.
        cexp = (jnp.dot(cn_ref[...].astype(jnp.float32),
                        w_ref[e_off:e_off + net_in, :],
                        preferred_element_type=jnp.float32)
                + w_ref[eb_off:eb_off + 1, :])                    # (n_rows, lane_w)
        prod = cexp * h                                           # broadcast row
        y = jnp.dot(prod, w_ref[s_off:s_off + lane_w, :],
                    preferred_element_type=jnp.float32)           # (n_rows, lane_w)
        y_ref[...] = y.astype(y_ref.dtype)

    return kernel


# ----------------------------------------------------------------------------
# Functional HyperNet wrapper (mirrors HyperNet.__init__ bookkeeping for a
# ConfNet(net_in_dim, net_out_dim, bias=True) target network).
# ----------------------------------------------------------------------------
class HyperNetJAX:
    def __init__(self, net_in_dim, net_out_dim, net_bias, input_dim,
                 hidden=(64, 64), key=None):
        if not net_bias:
            raise NotImplementedError("only the bias=True ConfNet target is implemented")

        # --- target-net parameter bookkeeping (mirrors HyperNet.__init__) ---
        self.net_in = int(net_in_dim)
        self.net_out = int(net_out_dim)
        self.n_layers = 1
        self.bias_list = [True]
        self.shape_list = [(self.net_in, self.net_out)]
        par_size = self.net_in * self.net_out
        bias_size = self.net_out
        self.ids_list = [[[0, par_size], [par_size, par_size + bias_size]]]
        self.output_dim = par_size + bias_size
        self._par_size = par_size

        # --- deterministic hnet parameter init (PyTorch nn.Linear-style uniform) ---
        layer_sizes = [int(input_dim)] + [int(h) for h in hidden] + [self.output_dim]
        n_lin = len(layer_sizes) - 1
        k = key if key is not None else jax.random.PRNGKey(0)
        ws, bs = [], []
        for fan_in, fan_out in zip(layer_sizes[:-1], layer_sizes[1:]):
            k, kw, kb = jax.random.split(k, 3)
            bound = 1.0 / float(fan_in) ** 0.5
            ws.append(jax.random.uniform(kw, (fan_out, fan_in), jnp.float32, -bound, bound))
            bs.append(jax.random.uniform(kb, (fan_out,), jnp.float32, -bound, bound))
        # PyTorch-convention (out, in) copies kept only for reference/export.
        self.torch_weights, self.torch_biases = ws, bs

        # --- pack EVERYTHING into one lane-dense zero-padded f32 slab (1 DMA/call) ---
        lane_w = _ceil_to(max(layer_sizes[1:]), 128)
        assert self.output_dim <= lane_w and self.net_out <= lane_w
        layer_offs = []        # (w_row_start, w_rows_used_in_dot, bias_row)
        cur = 0
        for li in range(n_lin):
            fan_in = layer_sizes[li]
            w_alloc = _ceil_to(fan_in, 8) if li == 0 else lane_w
            w_used = fan_in if li == 0 else lane_w
            b_row = cur + w_alloc
            layer_offs.append((cur, w_used, b_row))
            cur = b_row + 8
        e_off = cur                                   # row-expansion matrix (fused apply)
        eb_off = e_off + _ceil_to(self.net_in, 8)     # bias pick-up row
        s_off = eb_off + 8                            # column-selection matrix
        total_rows = s_off + lane_w

        slab = np.zeros((total_rows, lane_w), np.float32)
        for li, (w0, _, b_row) in enumerate(layer_offs):
            fan_in, fan_out = layer_sizes[li], layer_sizes[li + 1]
            slab[w0:w0 + fan_in, :fan_out] = np.asarray(ws[li]).T
            slab[b_row, :fan_out] = np.asarray(bs[li])
        for i in range(self.net_in):                  # E_top[i, i*no:(i+1)*no] = 1
            slab[e_off + i, i * self.net_out:(i + 1) * self.net_out] = 1.0
        slab[eb_off, par_size:self.output_dim] = 1.0  # E_bias picks the bias lanes
        for j in range(self.output_dim):              # S[j, j % net_out] = 1
            slab[s_off + j, j % self.net_out] = 1.0
        self.w_slab = jnp.asarray(slab)

        # --- static kernel config ---
        self._input_dim = int(input_dim)
        self._lane_w = lane_w
        self._layer_offs = layer_offs
        self._n_lin = n_lin
        self._e_off, self._eb_off, self._s_off = e_off, eb_off, s_off
        self._fwd_cache = {}      # keyed by batch size B
        self._fused_cache = {}    # keyed by ConfNet-input row count

    # ---- generation path (grid over batch; weights resident across the grid) ----
    def _get_forward(self, B):
        if B not in self._fwd_cache:
            d_in, lane_w = self._input_dim, self._lane_w
            rows = self.w_slab.shape[0]
            call = pl.pallas_call(
                _make_generate_kernel(self._layer_offs, self._n_lin),
                grid=(B,),
                out_shape=jax.ShapeDtypeStruct((B, 1, lane_w), jnp.float32),
                in_specs=[
                    pl.BlockSpec((1, 1, d_in), lambda b: (b, 0, 0)),
                    pl.BlockSpec((rows, lane_w), lambda b: (0, 0)),  # stays in VMEM
                ],
                out_specs=pl.BlockSpec((1, 1, lane_w), lambda b: (b, 0, 0)),
                compiler_params=pltpu.CompilerParams(
                    dimension_semantics=("parallel",)),
            )
            ni, no, ps, od = self.net_in, self.net_out, self._par_size, self.output_dim

            @jax.jit
            def fwd(xs, slab):
                out = call(xs.reshape(B, 1, d_in), slab)[:, 0, :]    # (B, lane_w)
                par = out[:, :ps].reshape(B, ni, no)
                bias = out[:, ps:od]
                return par, bias

            self._fwd_cache[B] = fwd
        return self._fwd_cache[B]

    def forward(self, x):
        """x: (1, input_dim) (or (input_dim,)). Returns [par (net_in, net_out),
        bias (net_out,)] — what HyperNet.forward would pass to net.set_pars()."""
        par, bias = self._get_forward(1)(x.reshape(1, self._input_dim), self.w_slab)
        return [par[0], bias[0]]

    def forward_batched(self, xs):
        """xs: (B, input_dim). Returns (par (B, net_in, net_out), bias (B, net_out))."""
        return self._get_forward(xs.shape[0])(xs, self.w_slab)

    # ---- fused generate + ConfNet apply (single launch, params stay in VMEM) ----
    def _get_fused(self, n_rows):
        if n_rows not in self._fused_cache:
            lane_w = self._lane_w
            call = pl.pallas_call(
                _make_fused_kernel(self._layer_offs, self._n_lin, self.net_in,
                                   self._e_off, self._eb_off, self._s_off, lane_w),
                out_shape=(jax.ShapeDtypeStruct((1, lane_w), jnp.float32),
                           jax.ShapeDtypeStruct((n_rows, lane_w), jnp.float32)),
                in_specs=[_VMEM, _VMEM, _VMEM],
                out_specs=(_VMEM, _VMEM),
            )
            ni, no, ps, od = self.net_in, self.net_out, self._par_size, self.output_dim

            @jax.jit
            def fused(x, cn, slab):
                out, y = call(x, cn, slab)
                flat = out[0, :od]
                return y[:, :no], flat[:ps].reshape(ni, no), flat[ps:]

            self._fused_cache[n_rows] = fused
        return self._fused_cache[n_rows]

    def forward_and_apply(self, x, cn_in):
        """Fused generate + ConfNet apply. Returns (y = cn_in @ par + bias, [par, bias])."""
        y, par, bias = self._get_fused(cn_in.shape[0])(
            x.reshape(1, self._input_dim), cn_in, self.w_slab)
        return y, [par, bias]


def confnet_apply(pars, inp):
    """ConfNet.forward with bias=True (plain-JAX fallback): inp @ par + bias."""
    par, bias = pars
    return inp @ par + bias


# ----------------------------------------------------------------------------
if __name__ == "__main__":
    key = jax.random.PRNGKey(0)
    k_x, k_hn, k_cn, k_xb = jax.random.split(key, 4)

    # Target net: ConfNet(input_dim=4, output_dim=3, bias=True) -> 4*3 + 3 = 15 outputs
    net_in, net_out = 4, 3
    input_dim = 8
    hnet = HyperNetJAX(net_in, net_out, net_bias=True,
                       input_dim=input_dim, hidden=(64, 64), key=k_hn)

    x = jax.random.normal(k_x, (1, input_dim), jnp.float32)
    cn_in = jax.random.normal(k_cn, (8, net_in), jnp.float32)
    xs = jax.random.normal(k_xb, (2, input_dim), jnp.float32)

    # Path 1: generate params (HyperNet.forward semantics, B=1)
    par, bias = hnet.forward(x)
    jax.block_until_ready(par)
    jax.block_until_ready(bias)

    # Path 2: batched generation (grid over B, "parallel" axis)
    par_b, bias_b = hnet.forward_batched(xs)
    jax.block_until_ready(par_b)

    # Path 3: fused generate + ConfNet apply (params consumed straight from VMEM)
    y, (par_f, bias_f) = hnet.forward_and_apply(x, cn_in)
    jax.block_until_ready(y)

    # Pure-JAX reference (MLP + slicing + ConfNet apply)
    def ref_flat(xi, ws, bs):
        h = xi
        for i, (w, b) in enumerate(zip(ws, bs)):
            h = h @ w.T + b
            if i < len(ws) - 1:
                h = jnp.maximum(h, 0.0)
        return h.reshape(-1)

    flat = ref_flat(x, hnet.torch_weights, hnet.torch_biases)
    ref_par = flat[: net_in * net_out].reshape(net_in, net_out)
    ref_bias = flat[net_in * net_out:]
    ref_y = cn_in @ ref_par + ref_bias

    assert jnp.allclose(par, ref_par, atol=1e-5, rtol=1e-5)
    assert jnp.allclose(bias, ref_bias, atol=1e-5, rtol=1e-5)
    assert jnp.allclose(par_f, ref_par, atol=1e-5, rtol=1e-5)
    assert jnp.allclose(bias_f, ref_bias, atol=1e-5, rtol=1e-5)
    assert jnp.allclose(y, ref_y, atol=1e-5, rtol=1e-5)

    for b in range(xs.shape[0]):
        flat_b = ref_flat(xs[b:b + 1], hnet.torch_weights, hnet.torch_biases)
        assert jnp.allclose(par_b[b], flat_b[: net_in * net_out].reshape(net_in, net_out),
                            atol=1e-5, rtol=1e-5)
        assert jnp.allclose(bias_b[b], flat_b[net_in * net_out:], atol=1e-5, rtol=1e-5)

    print("KERNEL_OK")
</pallas_src>

<mosaic_0001>
module attributes {stable_mosaic.version = 11 : i64} {
  func.func @kernel(%arg0: i32, %arg1: memref<1x1x8xf32, #tpu.memory_space<vmem>>, %arg2: memref<432x128xf32, #tpu.memory_space<vmem>>, %arg3: memref<1x1x128xf32, #tpu.memory_space<vmem>>) attributes {dimension_semantics = [#tpu.dimension_semantics<parallel>], iteration_bounds = array<i64: 1>, scalar_prefetch = 0 : i64, scratch_operands = 0 : i64, tpu.core_type = #tpu.core_type<tc>, window_params = [{transform_indices = @transform_0, window_bounds = array<i64: 1, 1, 8>}, {pipeline_mode = #tpu.pipeline_mode<synchronous>, transform_indices = @transform_1, window_bounds = array<i64: 432, 128>}, {transform_indices = @transform_2, window_bounds = array<i64: 1, 1, 128>}]} {
    %c0 = arith.constant 0 : index
    %c0_0 = arith.constant 0 : index
    %c0_1 = arith.constant 0 : index
    %0 = vector.load %arg1[%c0, %c0_0, %c0_1] : memref<1x1x8xf32, #tpu.memory_space<vmem>>, vector<1x1x8xf32>
    %1 = vector.shape_cast %0 : vector<1x1x8xf32> to vector<1x8xf32>
    %c0_2 = arith.constant 0 : index
    %c0_3 = arith.constant 0 : index
    %2 = vector.load %arg2[%c0_2, %c0_3] : memref<432x128xf32, #tpu.memory_space<vmem>>, vector<8x128xf32>
    %cst = arith.constant dense<0.000000e+00> : vector<1x128xf32>
    %3 = tpu.matmul %1, %2, %cst {dimension_numbers = #tpu.dot_dimension_numbers<[1], [0], [0], [1], [0, 0, 1, 1], [], []>} : vector<1x8xf32>, vector<8x128xf32>, vector<1x128xf32> -> vector<1x128xf32>
    %c8 = arith.constant 8 : index
    %c0_4 = arith.constant 0 : index
    %4 = vector.load %arg2[%c8, %c0_4] : memref<432x128xf32, #tpu.memory_space<vmem>>, vector<1x128xf32>
    %5 = arith.addf %3, %4 : vector<1x128xf32>
    %cst_5 = arith.constant 0.000000e+00 : f32
    %6 = vector.broadcast %cst_5 : f32 to vector<1x128xf32>
    %7 = arith.maximumf %5, %6 : vector<1x128xf32>
    %c16 = arith.constant 16 : index
    %c0_6 = arith.constant 0 : index
    %8 = vector.load %arg2[%c16, %c0_6] : memref<432x128xf32, #tpu.memory_space<vmem>>, vector<128x128xf32>
    %cst_7 = arith.constant dense<0.000000e+00> : vector<1x128xf32>
    %9 = tpu.matmul %7, %8, %cst_7 {dimension_numbers = #tpu.dot_dimension_numbers<[1], [0], [0], [1], [0, 0, 1, 1], [], []>} : vector<1x128xf32>, vector<128x128xf32>, vector<1x128xf32> -> vector<1x128xf32>
    %c144 = arith.constant 144 : index
    %c0_8 = arith.constant 0 : index
    %10 = vector.load %arg2[%c144, %c0_8] : memref<432x128xf32, #tpu.memory_space<vmem>>, vector<1x128xf32>
    %11 = arith.addf %9, %10 : vector<1x128xf32>
    %cst_9 = arith.constant 0.000000e+00 : f32
    %12 = vector.broadcast %cst_9 : f32 to vector<1x128xf32>
    %13 = arith.maximumf %11, %12 : vector<1x128xf32>
    %c152 = arith.constant 152 : index
    %c0_10 = arith.constant 0 : index
    %14 = vector.load %arg2[%c152, %c0_10] : memref<432x128xf32, #tpu.memory_space<vmem>>, vector<128x128xf32>
    %cst_11 = arith.constant dense<0.000000e+00> : vector<1x128xf32>
    %15 = tpu.matmul %13, %14, %cst_11 {dimension_numbers = #tpu.dot_dimension_numbers<[1], [0], [0], [1], [0, 0, 1, 1], [], []>} : vector<1x128xf32>, vector<128x128xf32>, vector<1x128xf32> -> vector<1x128xf32>
    %c280 = arith.constant 280 : index
    %c0_12 = arith.constant 0 : index
    %16 = vector.load %arg2[%c280, %c0_12] : memref<432x128xf32, #tpu.memory_space<vmem>>, vector<1x128xf32>
    %17 = arith.addf %15, %16 : vector<1x128xf32>
    %c0_13 = arith.constant 0 : index
    %c0_14 = arith.constant 0 : index
    %c0_15 = arith.constant 0 : index
    %18 = vector.load %arg3[%c0_13, %c0_14, %c0_15] : memref<1x1x128xf32, #tpu.memory_space<vmem>>, vector<1x1x128xf32>
    %19 = vector.shape_cast %18 : vector<1x1x128xf32> to vector<1x128xf32>
    %20 = vector.shape_cast %17 : vector<1x128xf32> to vector<1x1x128xf32>
    tpu.vector_store %arg3[%c0_13, %c0_14, %c0_15], %20 {strides = array<i32>} : memref<1x1x128xf32, #tpu.memory_space<vmem>>, vector<1x1x128xf32>,
    return
  }
  func.func @transform_0(%arg0: i32) -> (i32, i32, i32) {
    %c0_i32 = arith.constant 0 : i32
    %c0_i32_0 = arith.constant 0 : i32
    %c0_i32_1 = arith.constant 0 : i32
    return %arg0, %c0_i32, %c0_i32_0 : i32, i32, i32
  }
  func.func @transform_1(%arg0: i32) -> (i32, i32) {
    %c0_i32 = arith.constant 0 : i32
    %c0_i32_0 = arith.constant 0 : i32
    %c0_i32_1 = arith.constant 0 : i32
    return %c0_i32, %c0_i32_0 : i32, i32
  }
  func.func @transform_2(%arg0: i32) -> (i32, i32, i32) {
    %c0_i32 = arith.constant 0 : i32
    %c0_i32_0 = arith.constant 0 : i32
    %c0_i32_1 = arith.constant 0 : i32
    return %arg0, %c0_i32, %c0_i32_0 : i32, i32, i32
  }
}

</mosaic_0001>

<llo_original>
// kernel: fwd.1
$region0: #{fwd.1}
  #allocation0 [shape = 'u32[]', space=smem, size = 0x4, offset = 0x4, fixed_abs, tag = 'smem constant byte address 0x4 - core index']
  #allocation1 [shape = 'u32[144,128]{1,0:T(1,128)}', space=vmem, size = 0x12000, scoped, tag = 'internal scratch']
  %s0 = inlined_call_operand.vmem [shape: f32[1,1,8], index: 0, kind: input, shape index: {}]
  %s1 = inlined_call_operand.hbm [shape: f32[432,128], index: 1, kind: input, shape index: {}]
  %s2 = inlined_call_operand.vmem [shape: f32[1,1,128], index: 2, kind: output, shape index: {}]
  %s3 = sld [smem:[#allocation0]]
  $region22: #{fwd.1} parent=0
    _
  %s5 = ssub.s32 1, %s3
  %s6 = scalar_select 0, %s5, %s3
  $region1: #{fwd.1} parent=0
    #allocation2 [shape = 'u8[221184]{0}', space=vmem, size = 0x36000, scoped, tag = 'input window, operand 1, single buffered']
    #allocation3 [shape = 's32[1]{0}', space=sflag, size = 0x4, scoped, tag = 'scoped memory for fwd.1']
    %7 = vsyncpa [#allocation3], 0
    // Predicated region
    $region2: #{fwd.1} parent=1 // pred_check
      _
    $region3: #{fwd.1} parent=1 // pred_check_branch
      %9 = sbr.rel (0) target = $region5
    $region4: #{fwd.1} parent=1 // pred_region
      _
    $region5: #{fwd.1} parent=1 // pred_fallthru
      _
    // Predicated region
    $region6: #{fwd.1} parent=1 // pred_check
      _
    $region7: #{fwd.1} parent=1 // pred_check_branch
      %11 = sbr.rel (0) target = $region9
    $region8: #{fwd.1} parent=1 // pred_region
      %s13 = ssub.s32 6912, 6912
      %14 = vsyncadd [#allocation3], %s13
      %s15 = sshll.u32 [#allocation2], 4
      %s16 = int_to_ptr.vmem [resolvable:$true] %s15
      %21 = dma.hbm_to_vmem [thread:$0]  %s1, 6912, %s16, [#allocation3], 128, 128, 8
    $region9: #{fwd.1} parent=1 // pred_fallthru
      _
    // Predicated region
    $region10: #{fwd.1} parent=1 // pred_check
      _
    $region11: #{fwd.1} parent=1 // pred_check_branch
      %23 = sbr.rel (0) target = $region13
    $region12: #{fwd.1} parent=1 // pred_region
      %24 = dma.done [#allocation3], 6912
    $region13: #{fwd.1} parent=1 // pred_fallthru
      _
    %v25 = vld [vmem:[%s0] sm:$0x1]
    %v26 = vld [vmem:[#allocation2] sm:$0xff]
    %v27 = vld [vmem:[#allocation2 + $0x8] sm:$0x1]
    %vm28 = vcmask 64512
    %v30 = vsel %vm28, %v25, 0
    %32 = vmatprep.subr.mxu0 0.0
    %33 = vmatpush1.msra.mxu0 0.0
    %34 = vmatprep.subr.mxu0 0.0
    %35 = vmatpush1.msra.mxu0 0.0
    %36 = vmatprep.subr.mxu0 0.0
    %37 = vmatpush1.msra.mxu0 0.0
    %38 = vmatprep.subr.mxu0 0.0
    %39 = vmatpush1.msra.mxu0 0.0
    %40 = vmatprep.subr.mxu0 0.0
    %41 = vmatpush1.msra.mxu0 0.0
    %42 = vmatprep.subr.mxu0 0.0
    %43 = vmatpush1.msra.mxu0 0.0
    %44 = vmatprep.subr.mxu0 0.0
    %45 = vmatpush1.msra.mxu0 0.0
    %46 = vmatprep.subr.mxu0 0.0
    %47 = vmatpush1.msra.mxu0 0.0
    %48 = vmatprep.subr.mxu0 0.0
    %49 = vmatpush1.msra.mxu0 0.0
    %50 = vmatprep.subr.mxu0 0.0
    %51 = vmatpush1.msra.mxu0 0.0
    %52 = vmatprep.subr.mxu0 0.0
    %53 = vmatpush1.msra.mxu0 0.0
    %54 = vmatprep.subr.mxu0 0.0
    %55 = vmatpush1.msra.mxu0 0.0
    %56 = vmatprep.subr.mxu0 0.0
    %57 = vmatpush1.msra.mxu0 0.0
    %58 = vmatprep.subr.mxu0 0.0
    %59 = vmatpush1.msra.mxu0 0.0
    %60 = vmatprep.subr.mxu0 0.0
    %61 = vmatpush1.msra.mxu0 0.0
    %62 = vmatprep.subr.mxu0 0.0
    %63 = vmatpush1.msra.mxu0 %v26
    %64 = vmatprep.subr.mxu0 0.0
    %65 = vmatpush2.msra.mxu0 0.0
    %66 = vmatprep.subr.mxu0 0.0
    %67 = vmatpush2.msra.mxu0 0.0
    %68 = vmatprep.subr.mxu0 0.0
    %69 = vmatpush2.msra.mxu0 0.0
    %70 = vmatprep.subr.mxu0 0.0
    %71 = vmatpush2.msra.mxu0 0.0
    %72 = vmatprep.subr.mxu0 0.0
    %73 = vmatpush2.msra.mxu0 0.0
    %74 = vmatprep.subr.mxu0 0.0
    %75 = vmatpush2.msra.mxu0 0.0
    %76 = vmatprep.subr.mxu0 0.0
    %77 = vmatpush2.msra.mxu0 0.0
    %78 = vmatprep.subr.mxu0 0.0
    %79 = vmatpush2.msra.mxu0 0.0
    %80 = vmatprep.subr.mxu0 0.0
    %81 = vmatpush2.msra.mxu0 0.0
    %82 = vmatprep.subr.mxu0 0.0
    %83 = vmatpush2.msra.mxu0 0.0
    %84 = vmatprep.subr.mxu0 0.0
    %85 = vmatpush2.msra.mxu0 0.0
    %86 = vmatprep.subr.mxu0 0.0
    %87 = vmatpush2.msra.mxu0 0.0
    %88 = vmatprep.subr.mxu0 0.0
    %89 = vmatpush2.msra.mxu0 0.0
    %90 = vmatprep.subr.mxu0 0.0
    %91 = vmatpush2.msra.mxu0 0.0
    %92 = vmatprep.subr.mxu0 0.0
    %93 = vmatpush2.msra.mxu0 0.0
    %94 = vmatprep.subr.mxu0 0.0
    %95 = vmatpush2.msra.mxu0 0.0
    %96 = vmatprep.mubr.f32.mxu0 0.0
    %97 = vmatmul.mubr.f32.gmra.mxu0 %v30
    %v98 = vpop.f32.mrf.mxu0
    %v99 = vadd.f32 %v27, %v98
    %v100 = vpop.f32.mrf.mxu0
    %101 = vdwg.mxu0
    %v102 = vmax.f32 %v99, 0.0
    %v103 = vld [vmem:[#allocation2 + $0x10] sm:$0xff]
    %v104 = vld [vmem:[#allocation2 + $0x18] sm:$0xff]
    %v105 = vld [vmem:[#allocation2 + $0x20] sm:$0xff]
    %v106 = vld [vmem:[#allocation2 + $0x28] sm:$0xff]
    %v107 = vld [vmem:[#allocation2 + $0x30] sm:$0xff]
    %v108 = vld [vmem:[#allocation2 + $0x38] sm:$0xff]
    %v109 = vld [vmem:[#allocation2 + $0x40] sm:$0xff]
    %v110 = vld [vmem:[#allocation2 + $0x48] sm:$0xff]
    %v111 = vld [vmem:[#allocation2 + $0x50] sm:$0xff]
    %v112 = vld [vmem:[#allocation2 + $0x58] sm:$0xff]
    %v113 = vld [vmem:[#allocation2 + $0x60] sm:$0xff]
    %v114 = vld [vmem:[#allocation2 + $0x68] sm:$0xff]
    %v115 = vld [vmem:[#allocation2 + $0x70] sm:$0xff]
    %v116 = vld [vmem:[#allocation2 + $0x78] sm:$0xff]
    %v117 = vld [vmem:[#allocation2 + $0x80] sm:$0xff]
    %v118 = vld [vmem:[#allocation2 + $0x88] sm:$0xff]
    %v119 = vld [vmem:[#allocation2 + $0x90] sm:$0x1]
    %120 = vmatprep.subr.mxu0 0.0
    %121 = vmatpush1.msra.mxu0 %v118
    %122 = vmatprep.subr.mxu0 0.0
    %123 = vmatpush1.msra.mxu0 %v117
    %124 = vmatprep.subr.mxu0 0.0
    %125 = vmatpush1.msra.mxu0 %v116
    %126 = vmatprep.subr.mxu0 0.0
    %127 = vmatpush1.msra.mxu0 %v115
    %128 = vmatprep.subr.mxu0 0.0
    %129 = vmatpush1.msra.mxu0 %v114
    %130 = vmatprep.subr.mxu0 0.0
    %131 = vmatpush1.msra.mxu0 %v113
    %132 = vmatprep.subr.mxu0 0.0
    %133 = vmatpush1.msra.mxu0 %v112
    %134 = vmatprep.subr.mxu0 0.0
    %135 = vmatpush1.msra.mxu0 %v111
    %136 = vmatprep.subr.mxu0 0.0
    %137 = vmatpush1.msra.mxu0 %v110
    %138 = vmatprep.subr.mxu0 0.0
    %139 = vmatpush1.msra.mxu0 %v109
    %140 = vmatprep.subr.mxu0 0.0
    %141 = vmatpush1.msra.mxu0 %v108
    %142 = vmatprep.subr.mxu0 0.0
    %143 = vmatpush1.msra.mxu0 %v107
    %144 = vmatprep.subr.mxu0 0.0
    %145 = vmatpush1.msra.mxu0 %v106
    %146 = vmatprep.subr.mxu0 0.0
    %147 = vmatpush1.msra.mxu0 %v105
    %148 = vmatprep.subr.mxu0 0.0
    %149 = vmatpush1.msra.mxu0 %v104
    %150 = vmatprep.subr.mxu0 0.0
    %151 = vmatpush1.msra.mxu0 %v103
    %152 = vmatprep.subr.mxu0 0.0
    %153 = vmatpush2.msra.mxu0 0.0
    %154 = vmatprep.subr.mxu0 0.0
    %155 = vmatpush2.msra.mxu0 0.0
    %156 = vmatprep.subr.mxu0 0.0
    %157 = vmatpush2.msra.mxu0 0.0
    %158 = vmatprep.subr.mxu0 0.0
    %159 = vmatpush2.msra.mxu0 0.0
    %160 = vmatprep.subr.mxu0 0.0
    %161 = vmatpush2.msra.mxu0 0.0
    %162 = vmatprep.subr.mxu0 0.0
    %163 = vmatpush2.msra.mxu0 0.0
    %164 = vmatprep.subr.mxu0 0.0
    %165 = vmatpush2.msra.mxu0 0.0
    %166 = vmatprep.subr.mxu0 0.0
    %167 = vmatpush2.msra.mxu0 0.0
    %168 = vmatprep.subr.mxu0 0.0
    %169 = vmatpush2.msra.mxu0 0.0
    %170 = vmatprep.subr.mxu0 0.0
    %171 = vmatpush2.msra.mxu0 0.0
    %172 = vmatprep.subr.mxu0 0.0
    %173 = vmatpush2.msra.mxu0 0.0
    %174 = vmatprep.subr.mxu0 0.0
    %175 = vmatpush2.msra.mxu0 0.0
    %176 = vmatprep.subr.mxu0 0.0
    %177 = vmatpush2.msra.mxu0 0.0
    %178 = vmatprep.subr.mxu0 0.0
    %179 = vmatpush2.msra.mxu0 0.0
    %180 = vmatprep.subr.mxu0 0.0
    %181 = vmatpush2.msra.mxu0 0.0
    %182 = vmatprep.subr.mxu0 0.0
    %183 = vmatpush2.msra.mxu0 0.0
    %184 = vmatprep.mubr.f32.mxu0 0.0
    %185 = vmatmul.mubr.f32.gmra.mxu0 %v102
    %v186 = vpop.f32.mrf.mxu0
    %v187 = vadd.f32 %v119, %v186
    %v188 = vpop.f32.mrf.mxu0
    %189 = vdwg.mxu0
    %v190 = vmax.f32 %v187, 0.0
    %v191 = vld [vmem:[#allocation2 + $0x98] sm:$0xff]
    %v192 = vld [vmem:[#allocation2 + $0xa0] sm:$0xff]
    %v193 = vld [vmem:[#allocation2 + $0xa8] sm:$0xff]
    %v194 = vld [vmem:[#allocation2 + $0xb0] sm:$0xff]
    %v195 = vld [vmem:[#allocation2 + $0xb8] sm:$0xff]
    %v196 = vld [vmem:[#allocation2 + $0xc0] sm:$0xff]
    %v197 = vld [vmem:[#allocation2 + $0xc8] sm:$0xff]
    %v198 = vld [vmem:[#allocation2 + $0xd0] sm:$0xff]
    %v199 = vld [vmem:[#allocation2 + $0xd8] sm:$0xff]
    %v200 = vld [vmem:[#allocation2 + $0xe0] sm:$0xff]
    %v201 = vld [vmem:[#allocation2 + $0xe8] sm:$0xff]
    %v202 = vld [vmem:[#allocation2 + $0xf0] sm:$0xff]
    %v203 = vld [vmem:[#allocation2 + $0xf8] sm:$0xff]
    %v204 = vld [vmem:[#allocation2 + $0x100] sm:$0xff]
    %v205 = vld [vmem:[#allocation2 + $0x108] sm:$0xff]
    %v206 = vld [vmem:[#allocation2 + $0x110] sm:$0xff]
    %v207 = vld [vmem:[#allocation2 + $0x118] sm:$0x1]
    %208 = vmatprep.subr.mxu0 0.0
    %209 = vmatpush1.msra.mxu0 %v206
    %210 = vmatprep.subr.mxu0 0.0
    %211 = vmatpush1.msra.mxu0 %v205
    %212 = vmatprep.subr.mxu0 0.0
    %213 = vmatpush1.msra.mxu0 %v204
    %214 = vmatprep.subr.mxu0 0.0
    %215 = vmatpush1.msra.mxu0 %v203
    %216 = vmatprep.subr.mxu0 0.0
    %217 = vmatpush1.msra.mxu0 %v202
    %218 = vmatprep.subr.mxu0 0.0
    %219 = vmatpush1.msra.mxu0 %v201
    %220 = vmatprep.subr.mxu0 0.0
    %221 = vmatpush1.msra.mxu0 %v200
    %222 = vmatprep.subr.mxu0 0.0
    %223 = vmatpush1.msra.mxu0 %v199
    %224 = vmatprep.subr.mxu0 0.0
    %225 = vmatpush1.msra.mxu0 %v198
    %226 = vmatprep.subr.mxu0 0.0
    %227 = vmatpush1.msra.mxu0 %v197
    %228 = vmatprep.subr.mxu0 0.0
    %229 = vmatpush1.msra.mxu0 %v196
    %230 = vmatprep.subr.mxu0 0.0
    %231 = vmatpush1.msra.mxu0 %v195
    %232 = vmatprep.subr.mxu0 0.0
    %233 = vmatpush1.msra.mxu0 %v194
    %234 = vmatprep.subr.mxu0 0.0
    %235 = vmatpush1.msra.mxu0 %v193
    %236 = vmatprep.subr.mxu0 0.0
    %237 = vmatpush1.msra.mxu0 %v192
    %238 = vmatprep.subr.mxu0 0.0
    %239 = vmatpush1.msra.mxu0 %v191
    %240 = vmatprep.subr.mxu0 0.0
    %241 = vmatpush2.msra.mxu0 0.0
    %242 = vmatprep.subr.mxu0 0.0
    %243 = vmatpush2.msra.mxu0 0.0
    %244 = vmatprep.subr.mxu0 0.0
    %245 = vmatpush2.msra.mxu0 0.0
    %246 = vmatprep.subr.mxu0 0.0
    %247 = vmatpush2.msra.mxu0 0.0
    %248 = vmatprep.subr.mxu0 0.0
    %249 = vmatpush2.msra.mxu0 0.0
    %250 = vmatprep.subr.mxu0 0.0
    %251 = vmatpush2.msra.mxu0 0.0
    %252 = vmatprep.subr.mxu0 0.0
    %253 = vmatpush2.msra.mxu0 0.0
    %254 = vmatprep.subr.mxu0 0.0
    %255 = vmatpush2.msra.mxu0 0.0
    %256 = vmatprep.subr.mxu0 0.0
    %257 = vmatpush2.msra.mxu0 0.0
    %258 = vmatprep.subr.mxu0 0.0
    %259 = vmatpush2.msra.mxu0 0.0
    %260 = vmatprep.subr.mxu0 0.0
    %261 = vmatpush2.msra.mxu0 0.0
    %262 = vmatprep.subr.mxu0 0.0
    %263 = vmatpush2.msra.mxu0 0.0
    %264 = vmatprep.subr.mxu0 0.0
    %265 = vmatpush2.msra.mxu0 0.0
    %266 = vmatprep.subr.mxu0 0.0
    %267 = vmatpush2.msra.mxu0 0.0
    %268 = vmatprep.subr.mxu0 0.0
    %269 = vmatpush2.msra.mxu0 0.0
    %270 = vmatprep.subr.mxu0 0.0
    %271 = vmatpush2.msra.mxu0 0.0
    %272 = vmatprep.mubr.f32.mxu0 0.0
    %273 = vmatmul.mubr.f32.gmra.mxu0 %v190
    %v274 = vpop.f32.mrf.mxu0
    %v275 = vadd.f32 %v207, %v274
    %v276 = vpop.f32.mrf.mxu0
    %277 = vdwg.mxu0
    %278 = vst [vmem:[%s2] sm:$0x1] %v275
    // Predicated region
    $region14: #{fwd.1} parent=1 // pred_check
      _
    $region15: #{fwd.1} parent=1 // pred_check_branch
      %280 = sbr.rel (0) target = $region17
    $region16: #{fwd.1} parent=1 // pred_region
      _
    $region17: #{fwd.1} parent=1 // pred_fallthru
      _
    // Predicated region
    $region18: #{fwd.1} parent=1 // pred_check
      _
    $region19: #{fwd.1} parent=1 // pred_check_branch
      %282 = sbr.rel (0) target = $region21
    $region20: #{fwd.1} parent=1 // pred_region
      _
    $region21: #{fwd.1} parent=1 // pred_fallthru
      _
    %283 = vsyncpa [#allocation3], 1

</llo_original>
